<compile_context>
chip_gen: v7x
topology: tpu7x:2x2x1
jax: 0.10.0
libtpu: 0.0.40
codegen_flags: <defaults>
</compile_context>

<pallas_src>
import functools

import jax
import jax.numpy as jnp
from jax import lax
from jax.experimental import pallas as pl
from jax.experimental.pallas import tpu as pltpu

_LANE = 128
_SUBLANE = 8


def _cdiv(a, b):
    return -(-a // b)


def _round_up(v, m):
    return _cdiv(v, m) * m


def _sigmoid(z):
    # 0.5*(tanh(z/2)+1) == sigmoid(z); single EUP op instead of exp + divide.
    return 0.5 * (jnp.tanh(0.5 * z) + 1.0)


def _mm(a, b, use_bf16):
    if use_bf16:
        a = a.astype(jnp.bfloat16)
        b = b.astype(jnp.bfloat16)
    return jnp.dot(a, b, preferred_element_type=jnp.float32)


def _resnet_kernel_resident(*refs, n_hidden, unroll, use_bf16):
    """One (tm, sol_p) batch tile; all weights resident in VMEM (1 buffer)."""
    if n_hidden > 0:
        x_ref, w1_ref, b1_ref, w2_ref, b2_ref, w3_ref, out_ref = refs
    else:
        x_ref, w1_ref, b1_ref, w3_ref, out_ref = refs

    # layer1 + sigmoid
    h = _sigmoid(_mm(x_ref[...], w1_ref[...], use_bf16) + b1_ref[...])

    # layer2: (M-2) x [Linear(H, H), Sigmoid]
    if n_hidden > 0:
        def body(j, h):
            return _sigmoid(_mm(h, w2_ref[j], use_bf16) + b2_ref[j])
        h = lax.fori_loop(0, n_hidden, body, h, unroll=unroll)

    # layer3 (no bias) + residual.  Re-read x from VMEM here instead of holding
    # it in vregs across the whole layer loop.
    out_ref[...] = (x_ref[...] + _mm(h, w3_ref[...], use_bf16)).astype(out_ref.dtype)


def _resnet_kernel_streamed(x_ref, w1_ref, b1_ref, w2_hbm, b2_ref, w3_ref,
                            out_ref, wbuf, sem, *, n_hidden, use_bf16):
    """W2 stack too large for VMEM: stream one (h_p, h_p) layer at a time from
    HBM with a manual double buffer (prefetch layer j+1 while computing j)."""

    def fetch(j, slot):
        pltpu.make_async_copy(w2_hbm.at[j], wbuf.at[slot], sem.at[slot]).start()

    fetch(0, 0)

    h = _sigmoid(_mm(x_ref[...], w1_ref[...], use_bf16) + b1_ref[...])

    def body(j, h):
        slot = j % 2
        pltpu.make_async_copy(w2_hbm.at[0], wbuf.at[slot], sem.at[slot]).wait()

        @pl.when(j + 1 < n_hidden)
        def _():
            fetch(j + 1, 1 - slot)

        return _sigmoid(_mm(h, wbuf[slot], use_bf16) + b2_ref[j])

    h = lax.fori_loop(0, n_hidden, body, h)

    out_ref[...] = (x_ref[...] + _mm(h, w3_ref[...], use_bf16)).astype(out_ref.dtype)


def prepare_resnet_params(w1, b1, w2, b2, w3):
    """Pad weights once to lane-aligned f32 shapes; reuse across forward calls.

    Weight layout is y = x @ W + b:
      w1: (sol, H), b1: (H,), w2: (n_hidden, H, H), b2: (n_hidden, H), w3: (H, sol).
    """
    sol, H = w1.shape
    n_hidden = 0 if w2 is None else int(w2.shape[0])
    sol_p = _round_up(sol, _LANE)
    h_p = _round_up(H, _LANE)
    f32 = jnp.float32

    def pad(a, shape):
        a = jnp.asarray(a, f32)
        if a.shape == shape:
            return a
        out = jnp.zeros(shape, f32)
        return out.at[tuple(slice(0, d) for d in a.shape)].set(a)

    params = dict(
        sol=sol, H=H, n_hidden=n_hidden, sol_p=sol_p, h_p=h_p,
        w1=pad(w1, (sol_p, h_p)),
        b1=pad(jnp.reshape(b1, (1, H)), (1, h_p)),
        w3=pad(w3, (h_p, sol_p)),
    )
    if n_hidden > 0:
        params["w2"] = pad(w2, (n_hidden, h_p, h_p))
        params["b2"] = pad(jnp.reshape(b2, (n_hidden, 1, H)), (n_hidden, 1, h_p))
    return params


def resnet_forward(x, params, *, block_rows=512, use_bf16=False):
    """x: (N, sol). `params` from prepare_resnet_params (padding hoisted)."""
    N, sol = x.shape
    assert sol == params["sol"], (sol, params["sol"])
    sol_p, h_p, n_hidden = params["sol_p"], params["h_p"], params["n_hidden"]

    # ---- generation-aware VMEM budget --------------------------------------
    try:
        vmem_physical = int(pltpu.get_tpu_info().vmem_capacity_bytes)
    except Exception:
        vmem_physical = 64 * 2**20          # conservative (v7x per-TC) fallback
    vmem_cap = int(vmem_physical * 0.8)     # headroom for Mosaic internal scratch

    # ---- balanced batch tiling ----------------------------------------------
    n_tiles = _cdiv(N, max(block_rows, _SUBLANE))
    if n_tiles == 1 and N >= 8 * _SUBLANE:
        n_tiles = 2                         # keep both v7x TensorCores busy
    tm = _round_up(_cdiv(N, n_tiles), _SUBLANE)
    n_p = n_tiles * tm

    # ---- explicit VMEM accounting (per-spec buffer counts) ------------------
    itemsize = jnp.dtype(x.dtype).itemsize
    xo_bytes = 2 * 2 * tm * sol_p * itemsize               # x + out, 2 buffers each
    fixed_w_bytes = 4 * (sol_p * h_p + h_p + h_p * sol_p)  # W1, b1, W3 (1 buffer)
    w2_bytes = 4 * n_hidden * (h_p * h_p + h_p)            # W2 + b2 stack (1 buffer)
    act_bytes = 4 * tm * (2 * h_p + sol_p)                 # live activations
    resident_need = xo_bytes + fixed_w_bytes + w2_bytes + act_bytes

    stream_w2 = (n_hidden > 1) and (resident_need > vmem_cap)
    if stream_w2:
        need = resident_need - 4 * n_hidden * h_p * h_p + 2 * 4 * h_p * h_p
    else:
        need = resident_need
    vmem_limit = int(min(max(2 * need, 16 * 2**20), vmem_cap))

    # ---- pad x per call (weights were padded once up front) -----------------
    xp = x
    if (n_p, sol_p) != x.shape:
        xp = jnp.zeros((n_p, sol_p), x.dtype).at[:N, :sol].set(x)

    # ---- specs ---------------------------------------------------------------
    single = pl.Buffered(1)   # constant index_map -> single-buffer the weights
    in_specs = [pl.BlockSpec((tm, sol_p), lambda i: (i, 0))]
    args = [xp]
    in_specs += [
        pl.BlockSpec((sol_p, h_p), lambda i: (0, 0), pipeline_mode=single),
        pl.BlockSpec((1, h_p), lambda i: (0, 0), pipeline_mode=single),
    ]
    args += [params["w1"], params["b1"]]

    scratch_shapes = ()
    if n_hidden > 0:
        if stream_w2:
            in_specs.append(pl.BlockSpec(memory_space=pl.ANY))      # W2 stays in HBM
            scratch_shapes = (
                pltpu.VMEM((2, h_p, h_p), jnp.float32),             # layer double buffer
                pltpu.SemaphoreType.DMA((2,)),
            )
        else:
            in_specs.append(pl.BlockSpec((n_hidden, h_p, h_p),
                                         lambda i: (0, 0, 0),
                                         pipeline_mode=single))
        in_specs.append(pl.BlockSpec((n_hidden, 1, h_p),
                                     lambda i: (0, 0, 0),
                                     pipeline_mode=single))
        args += [params["w2"], params["b2"]]

    in_specs.append(pl.BlockSpec((h_p, sol_p), lambda i: (0, 0),
                                 pipeline_mode=single))
    args.append(params["w3"])

    out_spec = pl.BlockSpec((tm, sol_p), lambda i: (i, 0))   # lane-dense output

    if stream_w2:
        kernel = functools.partial(_resnet_kernel_streamed,
                                   n_hidden=n_hidden, use_bf16=use_bf16)
    else:
        kernel = functools.partial(
            _resnet_kernel_resident, n_hidden=n_hidden,
            unroll=(n_hidden <= 4 and h_p <= 256), use_bf16=use_bf16)

    H = params["H"]
    flops = 2 * N * (sol * H + n_hidden * H * H + H * sol) + N * sol
    transcendentals = N * (1 + n_hidden) * H
    bytes_accessed = (2 * n_p * sol_p * itemsize + fixed_w_bytes
                      + 4 * n_hidden * (h_p * h_p + h_p))

    out = pl.pallas_call(
        kernel,
        out_shape=jax.ShapeDtypeStruct((n_p, sol_p), x.dtype),
        grid=(n_tiles,),
        in_specs=in_specs,
        out_specs=out_spec,
        scratch_shapes=scratch_shapes,
        compiler_params=pltpu.CompilerParams(
            dimension_semantics=("parallel",),
            vmem_limit_bytes=vmem_limit,
        ),
        cost_estimate=pl.CostEstimate(
            flops=flops,
            transcendentals=transcendentals,
            bytes_accessed=bytes_accessed,
        ),
    )(*args)
    return out[:N, :sol]


def resnet_reference(x, w1, b1, w2, b2, w3):
    """Pure-JAX reference of the PyTorch forward pass."""
    h = jax.nn.sigmoid(x @ w1 + b1)
    for j in range(w2.shape[0]):
        h = jax.nn.sigmoid(h @ w2[j] + b2[j])
    return x + h @ w3


if __name__ == "__main__":
    # Small shapes consistent with the module: ResNet(sol_dim=16, hidden_units=32).
    batch, sol_dim, hidden_units = 8, 16, 32

    key = jax.random.PRNGKey(0)
    kx, k1, k2, k3, k4, k5 = jax.random.split(key, 6)
    scale = 0.1
    x = jax.random.normal(kx, (batch, sol_dim), jnp.float32)

    for M in (3, 2):   # M=3: one hidden layer; M=2: empty layer2 (gated specs)
        n_hidden = M - 2
        w1 = scale * jax.random.normal(k1, (sol_dim, hidden_units), jnp.float32)
        b1 = scale * jax.random.normal(k2, (hidden_units,), jnp.float32)
        w2 = scale * jax.random.normal(k3, (n_hidden, hidden_units, hidden_units), jnp.float32)
        b2 = scale * jax.random.normal(k4, (n_hidden, hidden_units), jnp.float32)
        w3 = scale * jax.random.normal(k5, (hidden_units, sol_dim), jnp.float32)

        params = prepare_resnet_params(w1, b1, w2, b2, w3)   # pad once, reuse
        out = jax.block_until_ready(resnet_forward(x, params))
        ref = resnet_reference(x, w1, b1, w2, b2, w3)

        assert out.shape == (batch, sol_dim)
        err = float(jnp.max(jnp.abs(out - ref)))
        assert jnp.allclose(out, ref, atol=1e-5, rtol=1e-5), (M, err)

    # TODO(synk): use_bf16=True (bf16 matmul operands, f32 accumulate) trades the
    # 1e-5 tolerance for ~3-8x MXU throughput on deep/wide stacks.
    print("KERNEL_OK")
</pallas_src>

<mosaic_0001>
module attributes {stable_mosaic.version = 11 : i64} {
  func.func @_resnet_kernel_resident(%arg0: i32, %arg1: memref<8x128xf32, #tpu.memory_space<vmem>>, %arg2: memref<128x128xf32, #tpu.memory_space<vmem>>, %arg3: memref<1x128xf32, #tpu.memory_space<vmem>>, %arg4: memref<1x128x128xf32, #tpu.memory_space<vmem>>, %arg5: memref<1x1x128xf32, #tpu.memory_space<vmem>>, %arg6: memref<128x128xf32, #tpu.memory_space<vmem>>, %arg7: memref<8x128xf32, #tpu.memory_space<vmem>>) attributes {dimension_semantics = [#tpu.dimension_semantics<parallel>], iteration_bounds = array<i64: 1>, scalar_prefetch = 0 : i64, scratch_operands = 0 : i64, tpu.core_type = #tpu.core_type<tc>, window_params = [{transform_indices = @transform_0, window_bounds = array<i64: 8, 128>}, {pipeline_mode = #tpu.pipeline_mode<synchronous>, transform_indices = @transform_1, window_bounds = array<i64: 128, 128>}, {pipeline_mode = #tpu.pipeline_mode<synchronous>, transform_indices = @transform_2, window_bounds = array<i64: 1, 128>}, {pipeline_mode = #tpu.pipeline_mode<synchronous>, transform_indices = @transform_3, window_bounds = array<i64: 1, 128, 128>}, {pipeline_mode = #tpu.pipeline_mode<synchronous>, transform_indices = @transform_4, window_bounds = array<i64: 1, 1, 128>}, {pipeline_mode = #tpu.pipeline_mode<synchronous>, transform_indices = @transform_5, window_bounds = array<i64: 128, 128>}, {transform_indices = @transform_6, window_bounds = array<i64: 8, 128>}]} {
    %c0 = arith.constant 0 : index
    %c0_0 = arith.constant 0 : index
    %0 = vector.load %arg1[%c0, %c0_0] : memref<8x128xf32, #tpu.memory_space<vmem>>, vector<8x128xf32>
    %c0_1 = arith.constant 0 : index
    %c0_2 = arith.constant 0 : index
    %1 = vector.load %arg2[%c0_1, %c0_2] : memref<128x128xf32, #tpu.memory_space<vmem>>, vector<128x128xf32>
    %cst = arith.constant dense<0.000000e+00> : vector<8x128xf32>
    %2 = tpu.matmul %0, %1, %cst {dimension_numbers = #tpu.dot_dimension_numbers<[1], [0], [0], [1], [0, 0, 1, 1], [], []>} : vector<8x128xf32>, vector<128x128xf32>, vector<8x128xf32> -> vector<8x128xf32>
    %c0_3 = arith.constant 0 : index
    %c0_4 = arith.constant 0 : index
    %3 = vector.load %arg3[%c0_3, %c0_4] : memref<1x128xf32, #tpu.memory_space<vmem>>, vector<1x128xf32>
    %4 = vector.broadcast %3 : vector<1x128xf32> to vector<8x128xf32>
    %5 = arith.addf %2, %4 : vector<8x128xf32>
    %cst_5 = arith.constant 5.000000e-01 : f32
    %6 = vector.broadcast %cst_5 : f32 to vector<8x128xf32>
    %7 = arith.mulf %6, %5 : vector<8x128xf32>
    %8 = math.tanh %7 : vector<8x128xf32>
    %cst_6 = arith.constant 1.000000e+00 : f32
    %9 = vector.broadcast %cst_6 : f32 to vector<8x128xf32>
    %10 = arith.addf %8, %9 : vector<8x128xf32>
    %cst_7 = arith.constant 5.000000e-01 : f32
    %11 = vector.broadcast %cst_7 : f32 to vector<8x128xf32>
    %12 = arith.mulf %11, %10 : vector<8x128xf32>
    %c0_i32 = arith.constant 0 : i32
    %13 = arith.index_cast %c0_i32 : i32 to index
    %c0_8 = arith.constant 0 : index
    %c0_9 = arith.constant 0 : index
    %14 = vector.load %arg4[%13, %c0_8, %c0_9] : memref<1x128x128xf32, #tpu.memory_space<vmem>>, vector<1x128x128xf32>
    %15 = vector.shape_cast %14 : vector<1x128x128xf32> to vector<128x128xf32>
    %cst_10 = arith.constant dense<0.000000e+00> : vector<8x128xf32>
    %16 = tpu.matmul %12, %15, %cst_10 {dimension_numbers = #tpu.dot_dimension_numbers<[1], [0], [0], [1], [0, 0, 1, 1], [], []>} : vector<8x128xf32>, vector<128x128xf32>, vector<8x128xf32> -> vector<8x128xf32>
    %17 = arith.index_cast %c0_i32 : i32 to index
    %c0_11 = arith.constant 0 : index
    %c0_12 = arith.constant 0 : index
    %18 = vector.load %arg5[%17, %c0_11, %c0_12] : memref<1x1x128xf32, #tpu.memory_space<vmem>>, vector<1x1x128xf32>
    %19 = vector.shape_cast %18 : vector<1x1x128xf32> to vector<1x128xf32>
    %20 = vector.broadcast %19 : vector<1x128xf32> to vector<8x128xf32>
    %21 = arith.addf %16, %20 : vector<8x128xf32>
    %cst_13 = arith.constant 5.000000e-01 : f32
    %22 = vector.broadcast %cst_13 : f32 to vector<8x128xf32>
    %23 = arith.mulf %22, %21 : vector<8x128xf32>
    %24 = math.tanh %23 : vector<8x128xf32>
    %cst_14 = arith.constant 1.000000e+00 : f32
    %25 = vector.broadcast %cst_14 : f32 to vector<8x128xf32>
    %26 = arith.addf %24, %25 : vector<8x128xf32>
    %cst_15 = arith.constant 5.000000e-01 : f32
    %27 = vector.broadcast %cst_15 : f32 to vector<8x128xf32>
    %28 = arith.mulf %27, %26 : vector<8x128xf32>
    %c1_i32 = arith.constant 1 : i32
    %c0_16 = arith.constant 0 : index
    %c0_17 = arith.constant 0 : index
    %29 = vector.load %arg1[%c0_16, %c0_17] : memref<8x128xf32, #tpu.memory_space<vmem>>, vector<8x128xf32>
    %c0_18 = arith.constant 0 : index
    %c0_19 = arith.constant 0 : index
    %30 = vector.load %arg6[%c0_18, %c0_19] : memref<128x128xf32, #tpu.memory_space<vmem>>, vector<128x128xf32>
    %cst_20 = arith.constant dense<0.000000e+00> : vector<8x128xf32>
    %31 = tpu.matmul %28, %30, %cst_20 {dimension_numbers = #tpu.dot_dimension_numbers<[1], [0], [0], [1], [0, 0, 1, 1], [], []>} : vector<8x128xf32>, vector<128x128xf32>, vector<8x128xf32> -> vector<8x128xf32>
    %32 = arith.addf %29, %31 : vector<8x128xf32>
    %c0_21 = arith.constant 0 : index
    %c0_22 = arith.constant 0 : index
    %33 = vector.load %arg7[%c0_21, %c0_22] : memref<8x128xf32, #tpu.memory_space<vmem>>, vector<8x128xf32>
    tpu.vector_store %arg7[%c0_21, %c0_22], %32 {strides = array<i32>} : memref<8x128xf32, #tpu.memory_space<vmem>>, vector<8x128xf32>,
    return
  }
  func.func @transform_0(%arg0: i32) -> (i32, i32) {
    %c0_i32 = arith.constant 0 : i32
    %c0_i32_0 = arith.constant 0 : i32
    return %arg0, %c0_i32 : i32, i32
  }
  func.func @transform_1(%arg0: i32) -> (i32, i32) {
    %c0_i32 = arith.constant 0 : i32
    %c0_i32_0 = arith.constant 0 : i32
    %c0_i32_1 = arith.constant 0 : i32
    return %c0_i32, %c0_i32_0 : i32, i32
  }
  func.func @transform_2(%arg0: i32) -> (i32, i32) {
    %c0_i32 = arith.constant 0 : i32
    %c0_i32_0 = arith.constant 0 : i32
    %c0_i32_1 = arith.constant 0 : i32
    return %c0_i32, %c0_i32_0 : i32, i32
  }
  func.func @transform_3(%arg0: i32) -> (i32, i32, i32) {
    %c0_i32 = arith.constant 0 : i32
    %c0_i32_0 = arith.constant 0 : i32
    %c0_i32_1 = arith.constant 0 : i32
    %c0_i32_2 = arith.constant 0 : i32
    return %c0_i32, %c0_i32_0, %c0_i32_1 : i32, i32, i32
  }
  func.func @transform_4(%arg0: i32) -> (i32, i32, i32) {
    %c0_i32 = arith.constant 0 : i32
    %c0_i32_0 = arith.constant 0 : i32
    %c0_i32_1 = arith.constant 0 : i32
    %c0_i32_2 = arith.constant 0 : i32
    return %c0_i32, %c0_i32_0, %c0_i32_1 : i32, i32, i32
  }
  func.func @transform_5(%arg0: i32) -> (i32, i32) {
    %c0_i32 = arith.constant 0 : i32
    %c0_i32_0 = arith.constant 0 : i32
    %c0_i32_1 = arith.constant 0 : i32
    return %c0_i32, %c0_i32_0 : i32, i32
  }
  func.func @transform_6(%arg0: i32) -> (i32, i32) {
    %c0_i32 = arith.constant 0 : i32
    %c0_i32_0 = arith.constant 0 : i32
    return %arg0, %c0_i32 : i32, i32
  }
}

</mosaic_0001>

<llo_original>
// kernel: tpu_custom_call.1
$region0: #{tpu_custom_call.1}
  #allocation0 [shape = 'u32[]', space=smem, size = 0x4, offset = 0x4, fixed_abs, tag = 'smem constant byte address 0x4 - core index']
  #allocation1 [shape = 'u32[144,128]{1,0:T(1,128)}', space=vmem, size = 0x12000, scoped, tag = 'internal scratch']
  %s0 = inlined_call_operand.hbm [shape: f32[8,128], index: 0, kind: input, shape index: {}]
  %s1 = inlined_call_operand.hbm [shape: f32[128,128], index: 1, kind: input, shape index: {}]
  %s2 = inlined_call_operand.vmem [shape: f32[1,128], index: 2, kind: input, shape index: {}]
  %s3 = inlined_call_operand.hbm [shape: f32[1,128,128], index: 3, kind: input, shape index: {}]
  %s4 = inlined_call_operand.vmem [shape: f32[1,1,128], index: 4, kind: input, shape index: {}]
  %s5 = inlined_call_operand.hbm [shape: f32[128,128], index: 5, kind: input, shape index: {}]
  %s6 = inlined_call_operand.hbm [shape: f32[8,128], index: 6, kind: output, shape index: {}]
  %s7 = sld [smem:[#allocation0]]
  $region50: #{tpu_custom_call.1} parent=0
    _
  %s9 = ssub.s32 1, %s7
  %s10 = scalar_select 0, %s9, %s7
  $region1: #{tpu_custom_call.1} parent=0
    #allocation2 [shape = 'u8[4096]{0}', space=vmem, size = 0x1000, scoped, tag = 'input window, operand 0, single buffered']
    #allocation3 [shape = 's32[1]{0}', space=sflag, size = 0x4, scoped, tag = 'scoped memory for tpu_custom_call.1']
    #allocation4 [shape = 's32[1]{0}', space=sflag, size = 0x4, scoped, tag = 'scoped memory for tpu_custom_call.1']
    #allocation5 [shape = 'u8[65536]{0}', space=vmem, size = 0x10000, scoped, tag = 'input window, operand 1, single buffered']
    #allocation6 [shape = 's32[1]{0}', space=sflag, size = 0x4, scoped, tag = 'scoped memory for tpu_custom_call.1']
    #allocation7 [shape = 'u8[65536]{0}', space=vmem, size = 0x10000, scoped, tag = 'input window, operand 3, single buffered']
    #allocation8 [shape = 'u8[65536]{0}', space=vmem, size = 0x10000, scoped, tag = 'input window, operand 5, single buffered']
    #allocation9 [shape = 's32[1]{0}', space=sflag, size = 0x4, scoped, tag = 'scoped memory for tpu_custom_call.1']
    #allocation10 [shape = 'u8[4096]{0}', space=vmem, size = 0x1000, scoped, tag = 'output window, operand 0, single buffered']
    %11 = vsyncpa [#allocation3], 0
    %12 = vsyncpa [#allocation6], 0
    %13 = vsyncpa [#allocation9], 0
    %14 = vsyncpa [#allocation4], 0
    // Predicated region
    $region2: #{tpu_custom_call.1} parent=1 // pred_check
      _
    $region3: #{tpu_custom_call.1} parent=1 // pred_check_branch
      %16 = sbr.rel (0) target = $region5
    $region4: #{tpu_custom_call.1} parent=1 // pred_region
      %s18 = ssub.s32 128, 128
      %19 = vsyncadd [#allocation3], %s18
      %s21 = sshll.u32 [#allocation2], 4
      %s22 = int_to_ptr.vmem [resolvable:$true] %s21
      %24 = dma.hbm_to_vmem [thread:$0]  %s0, 128, %s22, [#allocation3]
    $region5: #{tpu_custom_call.1} parent=1 // pred_fallthru
      _
    // Predicated region
    $region6: #{tpu_custom_call.1} parent=1 // pred_check
      _
    $region7: #{tpu_custom_call.1} parent=1 // pred_check_branch
      %26 = sbr.rel (0) target = $region9
    $region8: #{tpu_custom_call.1} parent=1 // pred_region
      %s28 = ssub.s32 2048, 2048
      %29 = vsyncadd [#allocation6], %s28
      %s30 = sshll.u32 [#allocation5], 4
      %s31 = int_to_ptr.vmem [resolvable:$true] %s30
      %36 = dma.hbm_to_vmem [thread:$0]  %s1, 2048, %s31, [#allocation6], 128, 128, 8
    $region9: #{tpu_custom_call.1} parent=1 // pred_fallthru
      _
    // Predicated region
    $region10: #{tpu_custom_call.1} parent=1 // pred_check
      _
    $region11: #{tpu_custom_call.1} parent=1 // pred_check_branch
      %38 = sbr.rel (0) target = $region13
    $region12: #{tpu_custom_call.1} parent=1 // pred_region
      _
    $region13: #{tpu_custom_call.1} parent=1 // pred_fallthru
      _
    // Predicated region
    $region14: #{tpu_custom_call.1} parent=1 // pred_check
      _
    $region15: #{tpu_custom_call.1} parent=1 // pred_check_branch
      %40 = sbr.rel (0) target = $region17
    $region16: #{tpu_custom_call.1} parent=1 // pred_region
      %s42 = ssub.s32 2048, 2048
      %43 = vsyncadd [#allocation6], %s42
      %s44 = sshll.u32 [#allocation7], 4
      %s45 = int_to_ptr.vmem [resolvable:$true] %s44
      %50 = dma.hbm_to_vmem [thread:$0]  %s3, 2048, %s45, [#allocation6], 128, 128, 8
    $region17: #{tpu_custom_call.1} parent=1 // pred_fallthru
      _
    // Predicated region
    $region18: #{tpu_custom_call.1} parent=1 // pred_check
      _
    $region19: #{tpu_custom_call.1} parent=1 // pred_check_branch
      %52 = sbr.rel (0) target = $region21
    $region20: #{tpu_custom_call.1} parent=1 // pred_region
      _
    $region21: #{tpu_custom_call.1} parent=1 // pred_fallthru
      _
    // Predicated region
    $region22: #{tpu_custom_call.1} parent=1 // pred_check
      _
    $region23: #{tpu_custom_call.1} parent=1 // pred_check_branch
      %54 = sbr.rel (0) target = $region25
    $region24: #{tpu_custom_call.1} parent=1 // pred_region
      %s56 = ssub.s32 2048, 2048
      %57 = vsyncadd [#allocation9], %s56
      %s58 = sshll.u32 [#allocation8], 4
      %s59 = int_to_ptr.vmem [resolvable:$true] %s58
      %64 = dma.hbm_to_vmem [thread:$0]  %s5, 2048, %s59, [#allocation9], 128, 128, 8
    $region25: #{tpu_custom_call.1} parent=1 // pred_fallthru
      _
    // Predicated region
    $region26: #{tpu_custom_call.1} parent=1 // pred_check
      _
    $region27: #{tpu_custom_call.1} parent=1 // pred_check_branch
      %66 = sbr.rel (0) target = $region29
    $region28: #{tpu_custom_call.1} parent=1 // pred_region
      %67 = dma.done [#allocation3], 128
    $region29: #{tpu_custom_call.1} parent=1 // pred_fallthru
      _
    // Predicated region
    $region30: #{tpu_custom_call.1} parent=1 // pred_check
      _
    $region31: #{tpu_custom_call.1} parent=1 // pred_check_branch
      %69 = sbr.rel (0) target = $region33
    $region32: #{tpu_custom_call.1} parent=1 // pred_region
      %70 = dma.done [#allocation6], 2048
    $region33: #{tpu_custom_call.1} parent=1 // pred_fallthru
      _
    // Predicated region
    $region34: #{tpu_custom_call.1} parent=1 // pred_check
      _
    $region35: #{tpu_custom_call.1} parent=1 // pred_check_branch
      %72 = sbr.rel (0) target = $region37
    $region36: #{tpu_custom_call.1} parent=1 // pred_region
      %73 = dma.done [#allocation6], 2048
    $region37: #{tpu_custom_call.1} parent=1 // pred_fallthru
      _
    // Predicated region
    $region38: #{tpu_custom_call.1} parent=1 // pred_check
      _
    $region39: #{tpu_custom_call.1} parent=1 // pred_check_branch
      %75 = sbr.rel (0) target = $region41
    $region40: #{tpu_custom_call.1} parent=1 // pred_region
      %76 = dma.done [#allocation9], 2048
    $region41: #{tpu_custom_call.1} parent=1 // pred_fallthru
      _
    %v77 = vld [vmem:[#allocation2] sm:$0xff]
    %v78 = vld [vmem:[#allocation5] sm:$0xff]
    %v79 = vld [vmem:[#allocation5 + $0x8] sm:$0xff]
    %v80 = vld [vmem:[#allocation5 + $0x10] sm:$0xff]
    %v81 = vld [vmem:[#allocation5 + $0x18] sm:$0xff]
    %v82 = vld [vmem:[#allocation5 + $0x20] sm:$0xff]
    %v83 = vld [vmem:[#allocation5 + $0x28] sm:$0xff]
    %v84 = vld [vmem:[#allocation5 + $0x30] sm:$0xff]
    %v85 = vld [vmem:[#allocation5 + $0x38] sm:$0xff]
    %v86 = vld [vmem:[#allocation5 + $0x40] sm:$0xff]
    %v87 = vld [vmem:[#allocation5 + $0x48] sm:$0xff]
    %v88 = vld [vmem:[#allocation5 + $0x50] sm:$0xff]
    %v89 = vld [vmem:[#allocation5 + $0x58] sm:$0xff]
    %v90 = vld [vmem:[#allocation5 + $0x60] sm:$0xff]
    %v91 = vld [vmem:[#allocation5 + $0x68] sm:$0xff]
    %v92 = vld [vmem:[#allocation5 + $0x70] sm:$0xff]
    %v93 = vld [vmem:[#allocation5 + $0x78] sm:$0xff]
    %v94 = vld [vmem:[%s2] sm:$0x1]
    %v96 = vlaneseq
    %v97 = vshrl.u32 %v96, 7
    %v98 = vsub.s32 0, %v97
    %v99 = vrot.slane %v94, %v98
    %101 = vmatprep.subr.mxu0 0.0
    %102 = vmatpush1.msra.mxu0 %v78
    %103 = vmatprep.subr.mxu0 0.0
    %104 = vmatpush1.msra.mxu0 %v79
    %105 = vmatprep.subr.mxu0 0.0
    %106 = vmatpush1.msra.mxu0 %v80
    %107 = vmatprep.subr.mxu0 0.0
    %108 = vmatpush1.msra.mxu0 %v81
    %109 = vmatprep.subr.mxu0 0.0
    %110 = vmatpush1.msra.mxu0 %v82
    %111 = vmatprep.subr.mxu0 0.0
    %112 = vmatpush1.msra.mxu0 %v83
    %113 = vmatprep.subr.mxu0 0.0
    %114 = vmatpush1.msra.mxu0 %v84
    %115 = vmatprep.subr.mxu0 0.0
    %116 = vmatpush1.msra.mxu0 %v85
    %117 = vmatprep.subr.mxu0 0.0
    %118 = vmatpush1.msra.mxu0 %v86
    %119 = vmatprep.subr.mxu0 0.0
    %120 = vmatpush1.msra.mxu0 %v87
    %121 = vmatprep.subr.mxu0 0.0
    %122 = vmatpush1.msra.mxu0 %v88
    %123 = vmatprep.subr.mxu0 0.0
    %124 = vmatpush1.msra.mxu0 %v89
    %125 = vmatprep.subr.mxu0 0.0
    %126 = vmatpush1.msra.mxu0 %v90
    %127 = vmatprep.subr.mxu0 0.0
    %128 = vmatpush1.msra.mxu0 %v91
    %129 = vmatprep.subr.mxu0 0.0
    %130 = vmatpush1.msra.mxu0 %v92
    %131 = vmatprep.subr.mxu0 0.0
    %132 = vmatpush1.msra.mxu0 %v93
    %133 = vmatprep.subr.mxu0 0.0
    %134 = vmatpush1.msra.mxu0 0.0
    %135 = vmatprep.subr.mxu0 0.0
    %136 = vmatpush1.msra.mxu0 0.0
    %137 = vmatprep.subr.mxu0 0.0
    %138 = vmatpush1.msra.mxu0 0.0
    %139 = vmatprep.subr.mxu0 0.0
    %140 = vmatpush1.msra.mxu0 0.0
    %141 = vmatprep.subr.mxu0 0.0
    %142 = vmatpush1.msra.mxu0 0.0
    %143 = vmatprep.subr.mxu0 0.0
    %144 = vmatpush1.msra.mxu0 0.0
    %145 = vmatprep.subr.mxu0 0.0
    %146 = vmatpush1.msra.mxu0 0.0
    %147 = vmatprep.subr.mxu0 0.0
    %148 = vmatpush1.msra.mxu0 0.0
    %149 = vmatprep.subr.mxu0 0.0
    %150 = vmatpush1.msra.mxu0 0.0
    %151 = vmatprep.subr.mxu0 0.0
    %152 = vmatpush1.msra.mxu0 0.0
    %153 = vmatprep.subr.mxu0 0.0
    %154 = vmatpush1.msra.mxu0 0.0
    %155 = vmatprep.subr.mxu0 0.0
    %156 = vmatpush1.msra.mxu0 0.0
    %157 = vmatprep.subr.mxu0 0.0
    %158 = vmatpush1.msra.mxu0 0.0
    %159 = vmatprep.subr.mxu0 0.0
    %160 = vmatpush1.msra.mxu0 0.0
    %161 = vmatprep.subr.mxu0 0.0
    %162 = vmatpush1.msra.mxu0 0.0
    %163 = vmatprep.subr.mxu0 0.0
    %164 = vmatpush1.msra.mxu0 0.0
    %165 = vmatprep.mubr.f32.mxu0 0.0
    %166 = vmatmul.mubr.f32.gmra.mrb[0].mxu0 %v77
    %v167 = vpop.f32.mrb[0].mxu0
    %v168 = vadd.f32 %v99, %v167
    %v169 = vpop.f32.mrb[0].mxu0
    %170 = vdwg.mxu0
    %v171 = vmul.f32 %v168, 0.5
    %v172 = vtanh.pop %v171
    %v173 = vadd.f32 %v172, 1.0
    %v174 = vmul.f32 %v173, 0.5
    %v175 = vld [vmem:[#allocation7] sm:$0xff]
    %v176 = vld [vmem:[#allocation7 + $0x8] sm:$0xff]
    %v177 = vld [vmem:[#allocation7 + $0x10] sm:$0xff]
    %v178 = vld [vmem:[#allocation7 + $0x18] sm:$0xff]
    %v179 = vld [vmem:[#allocation7 + $0x20] sm:$0xff]
    %v180 = vld [vmem:[#allocation7 + $0x28] sm:$0xff]
    %v181 = vld [vmem:[#allocation7 + $0x30] sm:$0xff]
    %v182 = vld [vmem:[#allocation7 + $0x38] sm:$0xff]
    %v183 = vld [vmem:[#allocation7 + $0x40] sm:$0xff]
    %v184 = vld [vmem:[#allocation7 + $0x48] sm:$0xff]
    %v185 = vld [vmem:[#allocation7 + $0x50] sm:$0xff]
    %v186 = vld [vmem:[#allocation7 + $0x58] sm:$0xff]
    %v187 = vld [vmem:[#allocation7 + $0x60] sm:$0xff]
    %v188 = vld [vmem:[#allocation7 + $0x68] sm:$0xff]
    %v189 = vld [vmem:[#allocation7 + $0x70] sm:$0xff]
    %v190 = vld [vmem:[#allocation7 + $0x78] sm:$0xff]
    %v191 = vld [vmem:[%s4] sm:$0x1]
    %v193 = vlaneseq
    %v194 = vshrl.u32 %v193, 7
    %v195 = vsub.s32 0, %v194
    %v196 = vrot.slane %v191, %v195
    %198 = vmatprep.subr.mxu0 0.0
    %199 = vmatpush1.msra.mxu0 %v175
    %200 = vmatprep.subr.mxu0 0.0
    %201 = vmatpush1.msra.mxu0 %v176
    %202 = vmatprep.subr.mxu0 0.0
    %203 = vmatpush1.msra.mxu0 %v177
    %204 = vmatprep.subr.mxu0 0.0
    %205 = vmatpush1.msra.mxu0 %v178
    %206 = vmatprep.subr.mxu0 0.0
    %207 = vmatpush1.msra.mxu0 %v179
    %208 = vmatprep.subr.mxu0 0.0
    %209 = vmatpush1.msra.mxu0 %v180
    %210 = vmatprep.subr.mxu0 0.0
    %211 = vmatpush1.msra.mxu0 %v181
    %212 = vmatprep.subr.mxu0 0.0
    %213 = vmatpush1.msra.mxu0 %v182
    %214 = vmatprep.subr.mxu0 0.0
    %215 = vmatpush1.msra.mxu0 %v183
    %216 = vmatprep.subr.mxu0 0.0
    %217 = vmatpush1.msra.mxu0 %v184
    %218 = vmatprep.subr.mxu0 0.0
    %219 = vmatpush1.msra.mxu0 %v185
    %220 = vmatprep.subr.mxu0 0.0
    %221 = vmatpush1.msra.mxu0 %v186
    %222 = vmatprep.subr.mxu0 0.0
    %223 = vmatpush1.msra.mxu0 %v187
    %224 = vmatprep.subr.mxu0 0.0
    %225 = vmatpush1.msra.mxu0 %v188
    %226 = vmatprep.subr.mxu0 0.0
    %227 = vmatpush1.msra.mxu0 %v189
    %228 = vmatprep.subr.mxu0 0.0
    %229 = vmatpush1.msra.mxu0 %v190
    %230 = vmatprep.subr.mxu0 0.0
    %231 = vmatpush1.msra.mxu0 0.0
    %232 = vmatprep.subr.mxu0 0.0
    %233 = vmatpush1.msra.mxu0 0.0
    %234 = vmatprep.subr.mxu0 0.0
    %235 = vmatpush1.msra.mxu0 0.0
    %236 = vmatprep.subr.mxu0 0.0
    %237 = vmatpush1.msra.mxu0 0.0
    %238 = vmatprep.subr.mxu0 0.0
    %239 = vmatpush1.msra.mxu0 0.0
    %240 = vmatprep.subr.mxu0 0.0
    %241 = vmatpush1.msra.mxu0 0.0
    %242 = vmatprep.subr.mxu0 0.0
    %243 = vmatpush1.msra.mxu0 0.0
    %244 = vmatprep.subr.mxu0 0.0
    %245 = vmatpush1.msra.mxu0 0.0
    %246 = vmatprep.subr.mxu0 0.0
    %247 = vmatpush1.msra.mxu0 0.0
    %248 = vmatprep.subr.mxu0 0.0
    %249 = vmatpush1.msra.mxu0 0.0
    %250 = vmatprep.subr.mxu0 0.0
    %251 = vmatpush1.msra.mxu0 0.0
    %252 = vmatprep.subr.mxu0 0.0
    %253 = vmatpush1.msra.mxu0 0.0
    %254 = vmatprep.subr.mxu0 0.0
    %255 = vmatpush1.msra.mxu0 0.0
    %256 = vmatprep.subr.mxu0 0.0
    %257 = vmatpush1.msra.mxu0 0.0
    %258 = vmatprep.subr.mxu0 0.0
    %259 = vmatpush1.msra.mxu0 0.0
    %260 = vmatprep.subr.mxu0 0.0
    %261 = vmatpush1.msra.mxu0 0.0
    %262 = vmatprep.mubr.f32.mxu0 0.0
    %263 = vmatmul.mubr.f32.gmra.mrb[0].mxu0 %v174
    %v264 = vpop.f32.mrb[0].mxu0
    %v265 = vadd.f32 %v196, %v264
    %v266 = vpop.f32.mrb[0].mxu0
    %267 = vdwg.mxu0
    %v268 = vmul.f32 %v265, 0.5
    %v269 = vtanh.pop %v268
    %v270 = vadd.f32 %v269, 1.0
    %v271 = vmul.f32 %v270, 0.5
    %v272 = vld [vmem:[#allocation8] sm:$0xff]
    %v273 = vld [vmem:[#allocation8 + $0x8] sm:$0xff]
    %v274 = vld [vmem:[#allocation8 + $0x10] sm:$0xff]
    %v275 = vld [vmem:[#allocation8 + $0x18] sm:$0xff]
    %v276 = vld [vmem:[#allocation8 + $0x20] sm:$0xff]
    %v277 = vld [vmem:[#allocation8 + $0x28] sm:$0xff]
    %v278 = vld [vmem:[#allocation8 + $0x30] sm:$0xff]
    %v279 = vld [vmem:[#allocation8 + $0x38] sm:$0xff]
    %v280 = vld [vmem:[#allocation8 + $0x40] sm:$0xff]
    %v281 = vld [vmem:[#allocation8 + $0x48] sm:$0xff]
    %v282 = vld [vmem:[#allocation8 + $0x50] sm:$0xff]
    %v283 = vld [vmem:[#allocation8 + $0x58] sm:$0xff]
    %v284 = vld [vmem:[#allocation8 + $0x60] sm:$0xff]
    %v285 = vld [vmem:[#allocation8 + $0x68] sm:$0xff]
    %v286 = vld [vmem:[#allocation8 + $0x70] sm:$0xff]
    %v287 = vld [vmem:[#allocation8 + $0x78] sm:$0xff]
    %288 = vmatprep.subr.mxu0 0.0
    %289 = vmatpush1.msra.mxu0 %v272
    %290 = vmatprep.subr.mxu0 0.0
    %291 = vmatpush1.msra.mxu0 %v273
    %292 = vmatprep.subr.mxu0 0.0
    %293 = vmatpush1.msra.mxu0 %v274
    %294 = vmatprep.subr.mxu0 0.0
    %295 = vmatpush1.msra.mxu0 %v275
    %296 = vmatprep.subr.mxu0 0.0
    %297 = vmatpush1.msra.mxu0 %v276
    %298 = vmatprep.subr.mxu0 0.0
    %299 = vmatpush1.msra.mxu0 %v277
    %300 = vmatprep.subr.mxu0 0.0
    %301 = vmatpush1.msra.mxu0 %v278
    %302 = vmatprep.subr.mxu0 0.0
    %303 = vmatpush1.msra.mxu0 %v279
    %304 = vmatprep.subr.mxu0 0.0
    %305 = vmatpush1.msra.mxu0 %v280
    %306 = vmatprep.subr.mxu0 0.0
    %307 = vmatpush1.msra.mxu0 %v281
    %308 = vmatprep.subr.mxu0 0.0
    %309 = vmatpush1.msra.mxu0 %v282
    %310 = vmatprep.subr.mxu0 0.0
    %311 = vmatpush1.msra.mxu0 %v283
    %312 = vmatprep.subr.mxu0 0.0
    %313 = vmatpush1.msra.mxu0 %v284
    %314 = vmatprep.subr.mxu0 0.0
    %315 = vmatpush1.msra.mxu0 %v285
    %316 = vmatprep.subr.mxu0 0.0
    %317 = vmatpush1.msra.mxu0 %v286
    %318 = vmatprep.subr.mxu0 0.0
    %319 = vmatpush1.msra.mxu0 %v287
    %320 = vmatprep.subr.mxu0 0.0
    %321 = vmatpush1.msra.mxu0 0.0
    %322 = vmatprep.subr.mxu0 0.0
    %323 = vmatpush1.msra.mxu0 0.0
    %324 = vmatprep.subr.mxu0 0.0
    %325 = vmatpush1.msra.mxu0 0.0
    %326 = vmatprep.subr.mxu0 0.0
    %327 = vmatpush1.msra.mxu0 0.0
    %328 = vmatprep.subr.mxu0 0.0
    %329 = vmatpush1.msra.mxu0 0.0
    %330 = vmatprep.subr.mxu0 0.0
    %331 = vmatpush1.msra.mxu0 0.0
    %332 = vmatprep.subr.mxu0 0.0
    %333 = vmatpush1.msra.mxu0 0.0
    %334 = vmatprep.subr.mxu0 0.0
    %335 = vmatpush1.msra.mxu0 0.0
    %336 = vmatprep.subr.mxu0 0.0
    %337 = vmatpush1.msra.mxu0 0.0
    %338 = vmatprep.subr.mxu0 0.0
    %339 = vmatpush1.msra.mxu0 0.0
    %340 = vmatprep.subr.mxu0 0.0
    %341 = vmatpush1.msra.mxu0 0.0
    %342 = vmatprep.subr.mxu0 0.0
    %343 = vmatpush1.msra.mxu0 0.0
    %344 = vmatprep.subr.mxu0 0.0
    %345 = vmatpush1.msra.mxu0 0.0
    %346 = vmatprep.subr.mxu0 0.0
    %347 = vmatpush1.msra.mxu0 0.0
    %348 = vmatprep.subr.mxu0 0.0
    %349 = vmatpush1.msra.mxu0 0.0
    %350 = vmatprep.subr.mxu0 0.0
    %351 = vmatpush1.msra.mxu0 0.0
    %352 = vmatprep.mubr.f32.mxu0 0.0
    %353 = vmatmul.mubr.f32.gmra.mrb[0].mxu0 %v271
    %v354 = vpop.f32.mrb[0].mxu0
    %v355 = vadd.f32 0.0, %v354
    %v356 = vpop.f32.mrb[0].mxu0
    %357 = vdwg.mxu0
    %v358 = vadd.f32 %v77, %v355
    %359 = vst [vmem:[#allocation10] sm:$0xff] %v358
    // Predicated region
    $region42: #{tpu_custom_call.1} parent=1 // pred_check
      _
    $region43: #{tpu_custom_call.1} parent=1 // pred_check_branch
      %361 = sbr.rel (0) target = $region45
    $region44: #{tpu_custom_call.1} parent=1 // pred_region
      %s363 = ssub.s32 128, 128
      %364 = vsyncadd [#allocation4], %s363
      %s366 = sshll.u32 [#allocation10], 4
      %s367 = int_to_ptr.vmem [resolvable:$true] %s366
      %369 = dma.vmem_to_hbm [thread:$0]  %s367, 128, %s6, [#allocation4]
    $region45: #{tpu_custom_call.1} parent=1 // pred_fallthru
      _
    // Predicated region
    $region46: #{tpu_custom_call.1} parent=1 // pred_check
      _
    $region47: #{tpu_custom_call.1} parent=1 // pred_check_branch
      %371 = sbr.rel (0) target = $region49
    $region48: #{tpu_custom_call.1} parent=1 // pred_region
      %372 = dma.done [#allocation4], 128
    $region49: #{tpu_custom_call.1} parent=1 // pred_fallthru
      _
    %373 = vsyncpa [#allocation3], 1
    %374 = vsyncpa [#allocation6], 1
    %375 = vsyncpa [#allocation9], 1
    %376 = vsyncpa [#allocation4], 1

</llo_original>
